<compile_context>
chip_gen: v5e
topology: v5e:2x2
jax: 0.10.0
libtpu: 0.0.40
codegen_flags: <defaults>
</compile_context>

<pallas_src>
import functools
import math
from types import SimpleNamespace

import jax
import jax.numpy as jnp
from jax.experimental import pallas as pl
from jax.experimental.pallas import tpu as pltpu


# ---------------------------------------------------------------------------
# small helpers
# ---------------------------------------------------------------------------

def _pick_tile(dim, candidates):
    """Largest candidate tile that evenly divides `dim`; else the full dim."""
    for c in candidates:
        if dim >= c and dim % c == 0:
            return c
    return dim


def _round_up(x, m):
    return ((x + m - 1) // m) * m


# ---------------------------------------------------------------------------
# Pallas kernels
# ---------------------------------------------------------------------------

def _dense_kernel(x_ref, w_ref, b_ref, o_ref, acc_ref, *, activation):
    k = pl.program_id(2)

    @pl.when(k == 0)
    def _():
        acc_ref[...] = jnp.zeros_like(acc_ref)

    acc_ref[...] += jnp.dot(
        x_ref[...].astype(jnp.float32),
        w_ref[...].astype(jnp.float32),
        preferred_element_type=jnp.float32,
    )

    @pl.when(k == pl.num_programs(2) - 1)
    def _():
        y = acc_ref[...] + b_ref[...].astype(jnp.float32)
        if activation == "gelu":
            # exact (erf) GELU, as used by HF Electra / torch.nn.GELU default
            y = 0.5 * y * (1.0 + jax.lax.erf(y * (1.0 / math.sqrt(2.0))))
        o_ref[...] = y.astype(o_ref.dtype)


def dense(x, w, b, activation=None):
    """x: (..., K), w: (K, N), b: (N,) -> (..., N). Tiled matmul + bias (+ GELU)."""
    lead = x.shape[:-1]
    K = x.shape[-1]
    N = w.shape[-1]
    x2 = x.reshape(-1, K)
    M = x2.shape[0]

    tm = _pick_tile(M, (512, 256, 128))
    tn = _pick_tile(N, (512, 256, 128))
    tk = _pick_tile(K, (512, 256, 128))

    out = pl.pallas_call(
        functools.partial(_dense_kernel, activation=activation),
        out_shape=jax.ShapeDtypeStruct((M, N), jnp.float32),
        grid=(M // tm, N // tn, K // tk),
        in_specs=[
            pl.BlockSpec((tm, tk), lambda i, j, k: (i, k)),
            pl.BlockSpec((tk, tn), lambda i, j, k: (k, j)),
            pl.BlockSpec((1, tn), lambda i, j, k: (0, j)),
        ],
        out_specs=pl.BlockSpec((tm, tn), lambda i, j, k: (i, j)),
        scratch_shapes=[pltpu.VMEM((tm, tn), jnp.float32)],
        compiler_params=pltpu.CompilerParams(
            dimension_semantics=("parallel", "parallel", "arbitrary")),
    )(x2, w, b.reshape(1, N))
    return out.reshape(*lead, N)


def _ln_kernel(x_ref, *rest, eps, residual):
    if residual:
        r_ref, g_ref, b_ref, o_ref = rest
        x = x_ref[...].astype(jnp.float32) + r_ref[...].astype(jnp.float32)
    else:
        g_ref, b_ref, o_ref = rest
        x = x_ref[...].astype(jnp.float32)
    mu = jnp.mean(x, axis=-1, keepdims=True)
    xc = x - mu
    var = jnp.mean(xc * xc, axis=-1, keepdims=True)
    y = xc * jax.lax.rsqrt(var + eps)
    o_ref[...] = (y * g_ref[...] + b_ref[...]).astype(o_ref.dtype)


def layer_norm(x, g, b, eps, residual=None):
    """LayerNorm(x [+ residual]) fused in one kernel; row-tiled grid."""
    lead = x.shape[:-1]
    H = x.shape[-1]
    x2 = x.reshape(-1, H)
    M = x2.shape[0]
    tm = _pick_tile(M, (512, 256, 128))

    row_spec = pl.BlockSpec((tm, H), lambda i: (i, 0))
    vec_spec = pl.BlockSpec((1, H), lambda i: (0, 0))

    operands = [x2]
    in_specs = [row_spec]
    if residual is not None:
        operands.append(residual.reshape(-1, H))
        in_specs.append(row_spec)
    operands += [g.reshape(1, H), b.reshape(1, H)]
    in_specs += [vec_spec, vec_spec]

    out = pl.pallas_call(
        functools.partial(_ln_kernel, eps=eps, residual=residual is not None),
        out_shape=jax.ShapeDtypeStruct((M, H), jnp.float32),
        grid=(M // tm,),
        in_specs=in_specs,
        out_specs=row_spec,
        compiler_params=pltpu.CompilerParams(dimension_semantics=("parallel",)),
    )(*operands)
    return out.reshape(*lead, H)


def _attn_kernel(q_ref, k_ref, v_ref, m_ref, o_ref, *, scale):
    q = q_ref[0].astype(jnp.float32) * scale                   # (nh, S, Dh)
    k = k_ref[0].astype(jnp.float32)                           # (nh, S, Dh)
    v = v_ref[0].astype(jnp.float32)                           # (nh, S, Dh)
    # scores = q @ k^T (batched over heads) + additive mask
    s = jnp.einsum("hqd,hkd->hqk", q, k,
                   preferred_element_type=jnp.float32)          # (nh, S, S)
    s = s + m_ref[...]                                          # (1,1,S) broadcast
    s = s - jnp.max(s, axis=-1, keepdims=True)
    p = jnp.exp(s)
    denom = jnp.sum(p, axis=-1, keepdims=True)
    p = p * pl.reciprocal(denom, approx=True)                   # EUP, not VPU divide
    o_ref[0] = jnp.einsum("hqk,hkd->hqd", p, v,
                          preferred_element_type=jnp.float32).astype(o_ref.dtype)


def multi_head_attention(qh, kh, vh, add_mask):
    """qh/kh/vh: (B, nh, S, Dh); add_mask: (B, 1, S) additive. Returns (B, nh, S, Dh)."""
    B, nh, S, Dh = qh.shape
    spec4 = pl.BlockSpec((1, nh, S, Dh), lambda b: (b, 0, 0, 0))
    mspec = pl.BlockSpec((1, 1, S), lambda b: (b, 0, 0))
    # TODO(synk): for Dh<128 the (…, Dh) stores stay lane-sparse; a head-slicing
    # BlockSpec on the contiguous (B,S,H) layout violates the (8,128) block rule,
    # so the head split/merge transposes remain XLA-side glue.
    ctx = pl.pallas_call(
        functools.partial(_attn_kernel, scale=1.0 / math.sqrt(Dh)),
        out_shape=jax.ShapeDtypeStruct((B, nh, S, Dh), jnp.float32),
        grid=(B,),
        in_specs=[spec4, spec4, spec4, mspec],
        out_specs=spec4,
        compiler_params=pltpu.CompilerParams(dimension_semantics=("parallel",)),
    )(qh, kh, vh, add_mask)
    return ctx


def _lstm_rec_kernel(xp_ref, h0_ref, c0_ref, whh_ref, o_ref, h_scr, c_scr):
    t = pl.program_id(0)

    @pl.when(t == 0)
    def _():
        h_scr[...] = h0_ref[...].astype(jnp.float32)
        c_scr[...] = c0_ref[...].astype(jnp.float32)

    h = h_scr[...]
    c = c_scr[...]
    # input projection (x @ W_ih^T + b) precomputed outside; only the recurrent
    # matmul stays on the serial critical path.
    gates = xp_ref[0].astype(jnp.float32) + jnp.dot(
        h, whh_ref[...].astype(jnp.float32), preferred_element_type=jnp.float32)
    H = h.shape[-1]
    # PyTorch gate order i, f, g, o. Slices are 128-aligned whenever H % 128 == 0.
    i_g = jax.nn.sigmoid(gates[:, 0:H])
    f_g = jax.nn.sigmoid(gates[:, H:2 * H])
    g_g = jnp.tanh(gates[:, 2 * H:3 * H])
    o_g = jax.nn.sigmoid(gates[:, 3 * H:4 * H])
    c_new = f_g * c + i_g * g_g
    h_new = o_g * jnp.tanh(c_new)
    h_scr[...] = h_new
    c_scr[...] = c_new
    o_ref[0] = h_new.astype(o_ref.dtype)


def lstm_layer(x_tm, h0, c0, w_ih_t, w_hh_t, b):
    """x_tm: (T, B, H) time-major. w_ih_t/w_hh_t: (H, 4H) pre-transposed, b: (4H,)."""
    T, B, H = x_tm.shape

    # Hoist the input projection out of the recurrence: one tiled (T*B, H)x(H, 4H).
    xp = dense(x_tm, w_ih_t, b)                      # (T, B, 4H)

    x_spec = pl.BlockSpec((1, B, 4 * H), lambda t: (t, 0, 0))
    o_spec = pl.BlockSpec((1, B, H), lambda t: (t, 0, 0))
    full2 = lambda shape: pl.BlockSpec(shape, lambda t: (0, 0))

    out = pl.pallas_call(
        _lstm_rec_kernel,
        out_shape=jax.ShapeDtypeStruct((T, B, H), jnp.float32),
        grid=(T,),
        in_specs=[x_spec, full2((B, H)), full2((B, H)), full2((H, 4 * H))],
        out_specs=o_spec,
        scratch_shapes=[pltpu.VMEM((B, H), jnp.float32),
                        pltpu.VMEM((B, H), jnp.float32)],
        compiler_params=pltpu.CompilerParams(dimension_semantics=("arbitrary",)),
    )(xp, h0, c0, w_hh_t)
    return out


# ---------------------------------------------------------------------------
# Model (glue: embeddings gather, reshapes, residual wiring, loss)
# ---------------------------------------------------------------------------

def electra_encoder(p, cfg, input_ids, attention_mask, token_type_ids):
    B, S = input_ids.shape
    H = cfg.hidden_size
    nh = cfg.num_attention_heads
    Dh = H // nh

    pos_ids = jnp.arange(S)
    emb = (p["word_emb"][input_ids]
           + p["pos_emb"][pos_ids][None, :, :]
           + p["type_emb"][token_type_ids])
    x = layer_norm(emb, p["emb_ln_g"], p["emb_ln_b"], cfg.layer_norm_eps)
    add_mask = ((1.0 - attention_mask.astype(jnp.float32)) * -1e9).reshape(B, 1, S)

    for lp in p["layers"]:
        # fused Q/K/V projection: one (H, 3H) matmul
        qkv = dense(x, lp["qkv_w"], lp["qkv_b"])                 # (B, S, 3H)
        qkvh = qkv.reshape(B, S, 3, nh, Dh).transpose(2, 0, 3, 1, 4)  # (3, B, nh, S, Dh)
        ctx = multi_head_attention(qkvh[0], qkvh[1], qkvh[2], add_mask)
        ctx = ctx.transpose(0, 2, 1, 3).reshape(B, S, H)
        attn_out = dense(ctx, lp["ao_w"], lp["ao_b"])
        x = layer_norm(attn_out, lp["attn_ln_g"], lp["attn_ln_b"],
                       cfg.layer_norm_eps, residual=x)           # LN(x + attn_out)
        inter = dense(x, lp["i_w"], lp["i_b"], activation="gelu")
        ffn_out = dense(inter, lp["o_w"], lp["o_b"])
        x = layer_norm(ffn_out, lp["out_ln_g"], lp["out_ln_b"],
                       cfg.layer_norm_eps, residual=x)           # LN(x + ffn_out)
    return x


def classifier_forward(params, cfg, encoder_input_ids, attention_mask=None,
                       token_type_ids=None, decoder_input_ids=None,
                       labels=None, beam_size=None):
    B, S = encoder_input_ids.shape
    if attention_mask is None:
        attention_mask = jnp.ones((B, S), jnp.int32)
    if token_type_ids is None:
        token_type_ids = jnp.zeros((B, S), jnp.int32)

    enc = electra_encoder(params["encoder"], cfg, encoder_input_ids,
                          attention_mask, token_type_ids)         # (B, S, H)
    cls = enc[:, 0, :]                                            # (B, H)
    cls = jnp.broadcast_to(cls[None], (cfg.layer_nums, B, cfg.hidden_size))
    if beam_size is not None:
        cls = jnp.broadcast_to(cls[:, :, None, :],
                               (cfg.layer_nums, B, beam_size, cfg.hidden_size))
        cls = cls.reshape(cfg.layer_nums, -1, cfg.hidden_size)
    h, c = cls, cls                                               # (layers, Bd, H)

    dec_emb = params["decoder"]["embed"][decoder_input_ids]       # (Bd, Td, H) glue gather
    x_tm = jnp.transpose(dec_emb, (1, 0, 2))                      # time-major (Td, Bd, H)
    for li, lw in enumerate(params["decoder"]["lstm"]):
        x_tm = lstm_layer(x_tm, h[li], c[li],
                          lw["w_ih_t"], lw["w_hh_t"], lw["b"])
    dec_out = jnp.transpose(x_tm, (1, 0, 2))                      # (Bd, Td, H)

    # lane-dense (padded to 128 cols) head matmul, then slice the real labels off
    logits = dense(dec_out, params["out_w"], params["out_b"])[..., :cfg.num_labels]

    loss = None
    if labels is not None:
        # glue: CrossEntropyLoss (mean reduction) in plain JAX
        flat = logits.reshape(-1, cfg.num_labels)
        lab = labels.reshape(-1)
        logp = jax.nn.log_softmax(flat, axis=-1)
        loss = -jnp.mean(jnp.take_along_axis(logp, lab[:, None], axis=-1))
    return {"loss": loss, "logits": logits}


# ---------------------------------------------------------------------------
# Deterministic parameter init (synthetic, no checkpoint)
# Weights are stored in the layout the kernels consume:
#   * QKV fused: (H, 3H) weight, (3H,) bias
#   * LSTM: pre-transposed (H, 4H) w_ih_t/w_hh_t, combined bias (4H,)
#   * classifier head padded to 128 output lanes
# ---------------------------------------------------------------------------

def init_params(key, cfg):
    H, I, L = cfg.hidden_size, cfg.intermediate_size, cfg.num_labels
    Lp = _round_up(L, 128)

    def nxt():
        nonlocal key
        key, sub = jax.random.split(key)
        return sub

    def normal(shape):
        return jax.random.normal(nxt(), shape, jnp.float32) * 0.02

    enc = {
        "word_emb": normal((cfg.vocab_size, H)),
        "pos_emb": normal((cfg.max_position_embeddings, H)),
        "type_emb": normal((cfg.type_vocab_size, H)),
        "emb_ln_g": jnp.ones((H,), jnp.float32),
        "emb_ln_b": jnp.zeros((H,), jnp.float32),
        "layers": [],
    }
    for _ in range(cfg.num_hidden_layers):
        enc["layers"].append({
            "qkv_w": normal((H, 3 * H)), "qkv_b": jnp.zeros((3 * H,), jnp.float32),
            "ao_w": normal((H, H)), "ao_b": jnp.zeros((H,), jnp.float32),
            "attn_ln_g": jnp.ones((H,), jnp.float32),
            "attn_ln_b": jnp.zeros((H,), jnp.float32),
            "i_w": normal((H, I)), "i_b": jnp.zeros((I,), jnp.float32),
            "o_w": normal((I, H)), "o_b": jnp.zeros((H,), jnp.float32),
            "out_ln_g": jnp.ones((H,), jnp.float32),
            "out_ln_b": jnp.zeros((H,), jnp.float32),
        })

    dec = {"embed": normal((L, H)), "lstm": []}
    for _ in range(cfg.layer_nums):
        dec["lstm"].append({
            "w_ih_t": normal((H, 4 * H)),                  # = PyTorch w_ih (4H,H) transposed
            "w_hh_t": normal((H, 4 * H)),                  # = PyTorch w_hh (4H,H) transposed
            "b": jnp.zeros((4 * H,), jnp.float32),         # = b_ih + b_hh
        })

    out_w = normal((H, L))
    out_w = jnp.pad(out_w, ((0, 0), (0, Lp - L)))          # lane-dense padded head
    out_b = jnp.zeros((Lp,), jnp.float32)

    return {"encoder": enc, "decoder": dec, "out_w": out_w, "out_b": out_b}


# ---------------------------------------------------------------------------

if __name__ == "__main__":
    cfg = SimpleNamespace(
        vocab_size=50,
        hidden_size=32,
        num_hidden_layers=2,
        num_attention_heads=4,
        intermediate_size=64,
        max_position_embeddings=16,
        type_vocab_size=2,
        layer_norm_eps=1e-12,
        num_labels=8,
        layer_nums=2,
    )

    root = jax.random.PRNGKey(0)
    pkey, k1, k2, k3 = jax.random.split(root, 4)
    params = init_params(pkey, cfg)

    B, S, Td = 2, 8, 4
    encoder_input_ids = jax.random.randint(k1, (B, S), 0, cfg.vocab_size)
    attention_mask = jnp.ones((B, S), jnp.int32)
    token_type_ids = jnp.zeros((B, S), jnp.int32)
    decoder_input_ids = jax.random.randint(k2, (B, Td), 0, cfg.num_labels)
    labels = jax.random.randint(k3, (B, Td), 0, cfg.num_labels)

    out = classifier_forward(params, cfg, encoder_input_ids, attention_mask,
                             token_type_ids, decoder_input_ids,
                             labels=labels, beam_size=None)
    jax.block_until_ready(out["logits"])
    if out["loss"] is not None:
        jax.block_until_ready(out["loss"])
    print("KERNEL_OK")
</pallas_src>

<mosaic_0001>
module attributes {stable_mosaic.version = 11 : i64} {
  func.func @_ln_kernel(%arg0: i32, %arg1: memref<16x32xf32, #tpu.memory_space<vmem>>, %arg2: memref<1x32xf32, #tpu.memory_space<vmem>>, %arg3: memref<1x32xf32, #tpu.memory_space<vmem>>, %arg4: memref<16x32xf32, #tpu.memory_space<vmem>>) attributes {dimension_semantics = [#tpu.dimension_semantics<parallel>], iteration_bounds = array<i64: 1>, scalar_prefetch = 0 : i64, scratch_operands = 0 : i64, tpu.core_type = #tpu.core_type<tc>, window_params = [{transform_indices = @transform_0, window_bounds = array<i64: 16, 32>}, {pipeline_mode = #tpu.pipeline_mode<synchronous>, transform_indices = @transform_1, window_bounds = array<i64: 1, 32>}, {pipeline_mode = #tpu.pipeline_mode<synchronous>, transform_indices = @transform_2, window_bounds = array<i64: 1, 32>}, {transform_indices = @transform_3, window_bounds = array<i64: 16, 32>}]} {
    %c0 = arith.constant 0 : index
    %c0_0 = arith.constant 0 : index
    %0 = vector.load %arg1[%c0, %c0_0] : memref<16x32xf32, #tpu.memory_space<vmem>>, vector<16x32xf32>
    %cst = arith.constant dense<0.000000e+00> : vector<16xf32>
    %1 = vector.multi_reduction <add>, %0, %cst [1] : vector<16x32xf32> to vector<16xf32>
    %2 = vector.shape_cast %1 : vector<16xf32> to vector<16x1xf32>
    %cst_1 = arith.constant 3.200000e+01 : f32
    %3 = vector.broadcast %cst_1 : f32 to vector<16x1xf32>
    %4 = arith.divf %2, %3 : vector<16x1xf32>
    %5 = vector.broadcast %4 : vector<16x1xf32> to vector<16x32xf32>
    %6 = arith.subf %0, %5 : vector<16x32xf32>
    %7 = arith.mulf %6, %6 : vector<16x32xf32>
    %cst_2 = arith.constant dense<0.000000e+00> : vector<16xf32>
    %8 = vector.multi_reduction <add>, %7, %cst_2 [1] : vector<16x32xf32> to vector<16xf32>
    %9 = vector.shape_cast %8 : vector<16xf32> to vector<16x1xf32>
    %cst_3 = arith.constant 3.200000e+01 : f32
    %10 = vector.broadcast %cst_3 : f32 to vector<16x1xf32>
    %11 = arith.divf %9, %10 : vector<16x1xf32>
    %cst_4 = arith.constant 9.99999996E-13 : f32
    %12 = vector.broadcast %cst_4 : f32 to vector<16x1xf32>
    %13 = arith.addf %11, %12 : vector<16x1xf32>
    %14 = math.rsqrt %13 : vector<16x1xf32>
    %15 = vector.broadcast %14 : vector<16x1xf32> to vector<16x32xf32>
    %16 = arith.mulf %6, %15 : vector<16x32xf32>
    %c0_5 = arith.constant 0 : index
    %c0_6 = arith.constant 0 : index
    %17 = vector.load %arg2[%c0_5, %c0_6] : memref<1x32xf32, #tpu.memory_space<vmem>>, vector<1x32xf32>
    %18 = vector.broadcast %17 : vector<1x32xf32> to vector<16x32xf32>
    %19 = arith.mulf %16, %18 : vector<16x32xf32>
    %c0_7 = arith.constant 0 : index
    %c0_8 = arith.constant 0 : index
    %20 = vector.load %arg3[%c0_7, %c0_8] : memref<1x32xf32, #tpu.memory_space<vmem>>, vector<1x32xf32>
    %21 = vector.broadcast %20 : vector<1x32xf32> to vector<16x32xf32>
    %22 = arith.addf %19, %21 : vector<16x32xf32>
    %c0_9 = arith.constant 0 : index
    %c0_10 = arith.constant 0 : index
    %23 = vector.load %arg4[%c0_9, %c0_10] : memref<16x32xf32, #tpu.memory_space<vmem>>, vector<16x32xf32>
    tpu.vector_store %arg4[%c0_9, %c0_10], %22 {strides = array<i32>} : memref<16x32xf32, #tpu.memory_space<vmem>>, vector<16x32xf32>,
    return
  }
  func.func @transform_0(%arg0: i32) -> (i32, i32) {
    %c0_i32 = arith.constant 0 : i32
    %c0_i32_0 = arith.constant 0 : i32
    return %arg0, %c0_i32 : i32, i32
  }
  func.func @transform_1(%arg0: i32) -> (i32, i32) {
    %c0_i32 = arith.constant 0 : i32
    %c0_i32_0 = arith.constant 0 : i32
    %c0_i32_1 = arith.constant 0 : i32
    return %c0_i32, %c0_i32_0 : i32, i32
  }
  func.func @transform_2(%arg0: i32) -> (i32, i32) {
    %c0_i32 = arith.constant 0 : i32
    %c0_i32_0 = arith.constant 0 : i32
    %c0_i32_1 = arith.constant 0 : i32
    return %c0_i32, %c0_i32_0 : i32, i32
  }
  func.func @transform_3(%arg0: i32) -> (i32, i32) {
    %c0_i32 = arith.constant 0 : i32
    %c0_i32_0 = arith.constant 0 : i32
    return %arg0, %c0_i32 : i32, i32
  }
}

</mosaic_0001>

<llo_original>
// kernel: tpu_custom_call.1
$region0: #{tpu_custom_call.1}
  #allocation0 [shape = 'u32[]', space=smem, size = 0x4, offset = 0x4, fixed_abs, tag = 'smem constant byte address 0x4 - core index']
  #allocation1 [shape = 'u32[72,128]{1,0:T(1,128)}', space=vmem, size = 0x9000, scoped, tag = 'internal scratch']
  %s0 = inlined_call_operand.hbm [shape: f32[16,32], index: 0, kind: input, shape index: {}]
  %s1 = inlined_call_operand.hbm [shape: f32[1,32], index: 1, kind: input, shape index: {}]
  %s2 = inlined_call_operand.vmem [shape: f32[1,32], index: 2, kind: input, shape index: {}]
  %s3 = inlined_call_operand.hbm [shape: f32[16,32], index: 3, kind: output, shape index: {}]
  %s4 = sld [smem:[#allocation0]]
  $region30: #{tpu_custom_call.1} parent=0
    _
  %s6 = ssub.s32 1, %s4
  %s7 = scalar_select 0, %s6, %s4
  $region1: #{tpu_custom_call.1} parent=0
    #allocation2 [shape = 'u8[8192]{0}', space=vmem, size = 0x2000, scoped, tag = 'input window, operand 0, single buffered']
    #allocation3 [shape = 's32[1]{0}', space=sflag, size = 0x4, scoped, tag = 'scoped memory for tpu_custom_call.1']
    #allocation4 [shape = 's32[1]{0}', space=sflag, size = 0x4, scoped, tag = 'scoped memory for tpu_custom_call.1']
    #allocation5 [shape = 'u8[512]{0}', space=vmem, size = 0x400, scoped, tag = 'input window, operand 1, single buffered']
    #allocation6 [shape = 's32[1]{0}', space=sflag, size = 0x4, scoped, tag = 'scoped memory for tpu_custom_call.1']
    #allocation7 [shape = 'u8[8192]{0}', space=vmem, size = 0x2000, scoped, tag = 'output window, operand 0, single buffered']
    %8 = vsyncpa [#allocation3], 0
    %9 = vsyncpa [#allocation6], 0
    %10 = vsyncpa [#allocation4], 0
    // Predicated region
    $region2: #{tpu_custom_call.1} parent=1 // pred_check
      _
    $region3: #{tpu_custom_call.1} parent=1 // pred_check_branch
      %12 = sbr.rel (0) target = $region5
    $region4: #{tpu_custom_call.1} parent=1 // pred_region
      %14 = vsyncadd [#allocation3], 0
      %s15 = sshll.u32 %s0, 4
      %s16 = int_to_ptr.hbm [resolvable:$true] %s15
      %s17 = sshll.u32 [#allocation2], 4
      %s18 = int_to_ptr.vmem [resolvable:$true] %s17
      %23 = dma.hbm_to_vmem [thread:$0]  %s16, 256, %s18, [#allocation3], 128, 128, 8
    $region5: #{tpu_custom_call.1} parent=1 // pred_fallthru
      _
    // Predicated region
    $region6: #{tpu_custom_call.1} parent=1 // pred_check
      _
    $region7: #{tpu_custom_call.1} parent=1 // pred_check_branch
      %25 = sbr.rel (0) target = $region9
    $region8: #{tpu_custom_call.1} parent=1 // pred_region
      %27 = vsyncadd [#allocation6], 0
      %s29 = sshll.u32 %s1, 4
      %s30 = int_to_ptr.hbm [resolvable:$true] %s29
      %s31 = sshll.u32 [#allocation5], 4
      %s32 = int_to_ptr.vmem [resolvable:$true] %s31
      %34 = dma.hbm_to_vmem [thread:$0]  %s30, 16, %s32, [#allocation6]
    $region9: #{tpu_custom_call.1} parent=1 // pred_fallthru
      _
    // Predicated region
    $region10: #{tpu_custom_call.1} parent=1 // pred_check
      _
    $region11: #{tpu_custom_call.1} parent=1 // pred_check_branch
      %36 = sbr.rel (0) target = $region13
    $region12: #{tpu_custom_call.1} parent=1 // pred_region
      _
    $region13: #{tpu_custom_call.1} parent=1 // pred_fallthru
      _
    // Predicated region
    $region14: #{tpu_custom_call.1} parent=1 // pred_check
      _
    $region15: #{tpu_custom_call.1} parent=1 // pred_check_branch
      %38 = sbr.rel (0) target = $region17
    $region16: #{tpu_custom_call.1} parent=1 // pred_region
      %40 = dma.done [#allocation3], 256
    $region17: #{tpu_custom_call.1} parent=1 // pred_fallthru
      _
    // Predicated region
    $region18: #{tpu_custom_call.1} parent=1 // pred_check
      _
    $region19: #{tpu_custom_call.1} parent=1 // pred_check_branch
      %42 = sbr.rel (0) target = $region21
    $region20: #{tpu_custom_call.1} parent=1 // pred_region
      %44 = dma.done [#allocation6], 16
    $region21: #{tpu_custom_call.1} parent=1 // pred_fallthru
      _
    %v45 = vld [vmem:[#allocation2] sm:$0xff]
    %v46 = vld [vmem:[#allocation2 + $0x8] sm:$0xff]
    %vm47 = vcmask 261120
    %v48 = vsel %vm47, %v45, 0.0
    %49 = vadd.xlane.f32.xlu0 %v48
    %v50 = vpop.xlane.xlu0 %49
    %v51 = vsel %vm47, %v46, 0.0
    %52 = vadd.xlane.f32.xlu0 %v51
    %v53 = vpop.xlane.xlu0 %52
    %v54 = vrcp.pop 32.0
    %v55 = vmul.f32 32.0, %v54
    %v56 = vsub.f32 1.0, %v55
    %v57 = vmul.f32 %v54, %v56
    %v58 = vadd.f32 %v54, %v57
    %vm59 = vweird.f32 %v54
    %v60 = vsel %vm59, %v54, %v58
    %v61 = vmul.f32 %v50, %v60
    %v62 = vmul.f32 %v53, %v60
    %v63 = vsub.f32 %v45, %v61
    %v64 = vsub.f32 %v46, %v62
    %v65 = vmul.f32 %v63, %v63
    %v66 = vmul.f32 %v64, %v64
    %v67 = vsel %vm47, %v65, 0.0
    %68 = vadd.xlane.f32.xlu0 %v67
    %v69 = vpop.xlane.xlu0 %68
    %v70 = vsel %vm47, %v66, 0.0
    %71 = vadd.xlane.f32.xlu0 %v70
    %v72 = vpop.xlane.xlu0 %71
    %v73 = vmul.f32 %v69, %v60
    %v74 = vmul.f32 %v72, %v60
    %v75 = vadd.f32 %v73, 1e-12
    %v76 = vadd.f32 %v74, 1e-12
    %v77 = vrsqrt.pop %v75
    %v78 = vmul.f32 %v77, %v75
    %v79 = vmul.f32 %v78, %v77
    %v80 = vmul.f32 0.5, %v79
    %v81 = vsub.f32 1.5, %v80
    %v82 = vmul.f32 %v77, %v81
    %vm83 = vweird.f32 %v75
    %vm84 = vweird.f32 %v77
    %vm85 = vmor %vm83, %vm84
    %v86 = vsel %vm85, %v77, %v82
    %v87 = vrsqrt.pop %v76
    %v88 = vmul.f32 %v87, %v76
    %v89 = vmul.f32 %v88, %v87
    %v90 = vmul.f32 0.5, %v89
    %v91 = vsub.f32 1.5, %v90
    %v92 = vmul.f32 %v87, %v91
    %vm93 = vweird.f32 %v76
    %vm94 = vweird.f32 %v87
    %vm95 = vmor %vm93, %vm94
    %v96 = vsel %vm95, %v87, %v92
    %v97 = vmul.f32 %v63, %v86
    %v98 = vmul.f32 %v64, %v96
    %v99 = vld [vmem:[#allocation5] sm:$0x1]
    %v101 = vperm.slane %v99, 0
    %v103 = vmul.f32 %v97, %v101
    %v104 = vmul.f32 %v98, %v101
    %v105 = vld [vmem:[%s2] sm:$0x1]
    %v107 = vperm.slane %v105, 0
    %v109 = vadd.f32 %v103, %v107
    %v110 = vadd.f32 %v104, %v107
    %111 = vst.msk [vmem:[#allocation7] sm:$0xff] %vm47, %v109
    %112 = vst.msk [vmem:[#allocation7 + $0x8] sm:$0xff] %vm47, %v110
    // Predicated region
    $region22: #{tpu_custom_call.1} parent=1 // pred_check
      _
    $region23: #{tpu_custom_call.1} parent=1 // pred_check_branch
      %114 = sbr.rel (0) target = $region25
    $region24: #{tpu_custom_call.1} parent=1 // pred_region
      %116 = vsyncadd [#allocation4], 0
      %s117 = sshll.u32 [#allocation7], 4
      %s118 = int_to_ptr.vmem [resolvable:$true] %s117
      %s119 = sshll.u32 %s3, 4
      %s120 = int_to_ptr.hbm [resolvable:$true] %s119
      %125 = dma.vmem_to_hbm [thread:$0]  %s118, 256, %s120, [#allocation4], 128, 128, 8
    $region25: #{tpu_custom_call.1} parent=1 // pred_fallthru
      _
    // Predicated region
    $region26: #{tpu_custom_call.1} parent=1 // pred_check
      _
    $region27: #{tpu_custom_call.1} parent=1 // pred_check_branch
      %127 = sbr.rel (0) target = $region29
    $region28: #{tpu_custom_call.1} parent=1 // pred_region
      %129 = dma.done [#allocation4], 256
    $region29: #{tpu_custom_call.1} parent=1 // pred_fallthru
      _
    %130 = vsyncpa [#allocation3], 1
    %131 = vsyncpa [#allocation6], 1
    %132 = vsyncpa [#allocation4], 1

</llo_original>
